<compile_context>
chip_gen: v6e
topology: v6e:2x2x1
jax: 0.10.0
libtpu: 0.0.40
codegen_flags: <defaults>
</compile_context>

<pallas_src>
import functools

import jax
import jax.numpy as jnp
from jax import lax
from jax.experimental import pallas as pl
from jax.experimental.pallas import tpu as pltpu


_LANES = 128
_SUBLANES = 8
_NEG = -1.0e30   # finite stand-in for -inf (Python float -> literal, not a captured const)


def _circle_loss_kernel(sp_ref, sn_ref, out_ref,
                        mp_ref, lp_ref, mn_ref, ln_ref,
                        *, m, gamma, np_valid, nn_valid, block_rows):
    i = pl.program_id(0)
    nsteps = pl.num_programs(0)

    # ---- init vreg-shaped online-logsumexp accumulators --------------------
    @pl.when(i == 0)
    def _init():
        mp_ref[...] = jnp.full(mp_ref.shape, _NEG, jnp.float32)
        lp_ref[...] = jnp.zeros(lp_ref.shape, jnp.float32)
        mn_ref[...] = jnp.full(mn_ref.shape, _NEG, jnp.float32)
        ln_ref[...] = jnp.zeros(ln_ref.shape, jnp.float32)

    rows, cols = block_rows, _LANES
    groups = rows // _SUBLANES
    chunk = rows * cols
    base = i * chunk
    ridx = lax.broadcasted_iota(jnp.int32, (rows, cols), 0)
    cidx = lax.broadcasted_iota(jnp.int32, (rows, cols), 1)
    idx = base + ridx * cols + cidx          # global element index of this tile

    delta_p = 1.0 - m
    delta_n = m

    def _online_update(logits, m_ref, l_ref):
        # logits: (rows, 128) f32, masked entries already at _NEG.
        x = logits.reshape(groups, _SUBLANES, _LANES)
        tile_max = jnp.max(x, axis=0)                      # (8,128) elementwise across vregs
        m_old = m_ref[...]
        m_new = jnp.maximum(m_old, tile_max)
        sum_exp = jnp.sum(jnp.exp(x - m_new[None]), axis=0)  # (8,128)
        l_ref[...] = l_ref[...] * jnp.exp(m_old - m_new) + sum_exp
        m_ref[...] = m_new

    # ---- positive-similarity stream ----------------------------------------
    sp = sp_ref[...].astype(jnp.float32)
    ap = jnp.maximum(-sp + 1.0 + m, 0.0)
    logit_p = -ap * (sp - delta_p) * gamma
    logit_p = jnp.where(idx < np_valid, logit_p, _NEG)
    _online_update(logit_p, mp_ref, lp_ref)

    # ---- negative-similarity stream ----------------------------------------
    sn = sn_ref[...].astype(jnp.float32)
    an = jnp.maximum(sn + m, 0.0)
    logit_n = an * (sn - delta_n) * gamma
    logit_n = jnp.where(idx < nn_valid, logit_n, _NEG)
    _online_update(logit_n, mn_ref, ln_ref)

    # ---- finalize: reduce accumulators, combine LSEs, stable softplus -------
    @pl.when(i == nsteps - 1)
    def _finalize():
        def _lse(m_ref, l_ref):
            mval = m_ref[...]
            lval = l_ref[...]
            gmax = jnp.max(mval, keepdims=True)            # (1,1)
            total = jnp.sum(lval * jnp.exp(mval - gmax), keepdims=True)
            return gmax + jnp.log(total)

        x = _lse(mp_ref, lp_ref) + _lse(mn_ref, ln_ref)    # (1,1)
        out_ref[...] = jnp.maximum(x, 0.0) + jnp.log1p(jnp.exp(-jnp.abs(x)))


def circle_loss_ref(sp, sn, m, gamma):
    """Pure-JAX reference mirroring the PyTorch module."""
    sp = sp.astype(jnp.float32)
    sn = sn.astype(jnp.float32)
    ap = jnp.maximum(-sp + 1.0 + m, 0.0)
    an = jnp.maximum(sn + m, 0.0)
    delta_p = 1.0 - m
    delta_n = m
    logit_p = -ap * (sp - delta_p) * gamma
    logit_n = an * (sn - delta_n) * gamma
    x = (jax.scipy.special.logsumexp(logit_n, axis=0)
         + jax.scipy.special.logsumexp(logit_p, axis=0))
    return jax.nn.softplus(x)


def _pad_to_chunks(x, block_rows):
    """Pad a 1-D array to a whole number of (block_rows, 128) tiles."""
    chunk = block_rows * _LANES
    n = x.shape[0]
    n_chunks = max(1, (n + chunk - 1) // chunk)
    pad = n_chunks * chunk - n
    if pad:
        x = jnp.pad(x, (0, pad))          # pad value 0 is masked in-kernel
    return x.reshape(n_chunks * block_rows, _LANES), n_chunks


def circle_loss(sp, sn, m, gamma, *, block_rows=512, min_pallas_elems=1024):
    """Pallas implementation of CircleLoss.forward(sp, sn) -> scalar loss."""
    sp = jnp.asarray(sp).reshape(-1)
    sn = jnp.asarray(sn).reshape(-1)
    np_valid = int(sp.shape[0])
    nn_valid = int(sn.shape[0])

    # Tiny inputs: a Pallas launch is pure overhead vs. a fused XLA reduce.
    if max(np_valid, nn_valid) < min_pallas_elems:
        return circle_loss_ref(sp, sn, m, gamma)

    # Clamp chunk size to the data and to a multiple of 8 sublanes.
    max_rows_needed = (max(np_valid, nn_valid) + _LANES - 1) // _LANES
    block_rows = min(int(block_rows), max_rows_needed)
    block_rows = max(_SUBLANES, ((block_rows + _SUBLANES - 1) // _SUBLANES) * _SUBLANES)

    sp2, np_chunks = _pad_to_chunks(sp, block_rows)
    sn2, nn_chunks = _pad_to_chunks(sn, block_rows)
    nsteps = max(np_chunks, nn_chunks)

    kernel = functools.partial(
        _circle_loss_kernel,
        m=float(m), gamma=float(gamma),
        np_valid=np_valid, nn_valid=nn_valid, block_rows=block_rows)

    out = pl.pallas_call(
        kernel,
        out_shape=jax.ShapeDtypeStruct((1, 1), jnp.float32),
        grid=(nsteps,),
        in_specs=[
            # Both streams advance along the same chunk axis; the shorter one
            # clamps its block index (its tail chunks are fully masked).
            pl.BlockSpec((block_rows, _LANES),
                         lambda i: (jnp.minimum(i, np_chunks - 1), 0)),
            pl.BlockSpec((block_rows, _LANES),
                         lambda i: (jnp.minimum(i, nn_chunks - 1), 0)),
        ],
        out_specs=pl.BlockSpec((1, 1), lambda i: (0, 0)),
        scratch_shapes=[pltpu.VMEM((_SUBLANES, _LANES), jnp.float32)] * 4,
        compiler_params=pltpu.CompilerParams(
            dimension_semantics=("arbitrary",)),
    )(sp2, sn2)
    return out[0, 0]


if __name__ == "__main__":
    # CircleLoss hyper-parameters (deterministic, set in-script).
    m = 0.25
    gamma = 64.0

    key = jax.random.PRNGKey(0)
    kp, kn = jax.random.split(key)

    # Moderately sized cosine-similarity vectors (non-multiples of the chunk
    # size so both the in-kernel masking and the clamped-index paths are
    # exercised).  A small block_rows gives a multi-step grid.
    sp = jax.random.uniform(kp, (1500,), dtype=jnp.float32, minval=-1.0, maxval=1.0)
    sn = jax.random.uniform(kn, (4000,), dtype=jnp.float32, minval=-1.0, maxval=1.0)

    loss = circle_loss(sp, sn, m, gamma, block_rows=8, min_pallas_elems=1024)
    loss = jax.block_until_ready(loss)

    ref = circle_loss_ref(sp, sn, m, gamma)
    assert jnp.allclose(loss, ref, rtol=1e-5, atol=1e-4), (loss, ref)

    # Tiny-input regime takes the pure-XLA fallback path (no Pallas launch).
    sp_s = jax.random.uniform(kp, (8,), dtype=jnp.float32, minval=-1.0, maxval=1.0)
    sn_s = jax.random.uniform(kn, (16,), dtype=jnp.float32, minval=-1.0, maxval=1.0)
    loss_s = jax.block_until_ready(circle_loss(sp_s, sn_s, m, gamma))
    ref_s = circle_loss_ref(sp_s, sn_s, m, gamma)
    assert jnp.allclose(loss_s, ref_s, rtol=1e-5, atol=1e-5), (loss_s, ref_s)

    print("KERNEL_OK")
</pallas_src>

<mosaic_0001>
module attributes {stable_mosaic.version = 11 : i64} {
  func.func @_circle_loss_kernel(%arg0: i32, %arg1: memref<8x128xf32, #tpu.memory_space<vmem>>, %arg2: memref<8x128xf32, #tpu.memory_space<vmem>>, %arg3: memref<1x1xf32, #tpu.memory_space<vmem>>, %arg4: memref<8x128xf32, #tpu.memory_space<vmem>>, %arg5: memref<8x128xf32, #tpu.memory_space<vmem>>, %arg6: memref<8x128xf32, #tpu.memory_space<vmem>>, %arg7: memref<8x128xf32, #tpu.memory_space<vmem>>) attributes {dimension_semantics = [#tpu.dimension_semantics<arbitrary>], iteration_bounds = array<i64: 4>, scalar_prefetch = 0 : i64, scratch_operands = 4 : i64, tpu.core_type = #tpu.core_type<tc>, window_params = [{transform_indices = @transform_0, window_bounds = array<i64: 8, 128>}, {transform_indices = @transform_1, window_bounds = array<i64: 8, 128>}, {pipeline_mode = #tpu.pipeline_mode<synchronous>, transform_indices = @transform_2, window_bounds = array<i64: 1, 1>}]} {
    %c0_i32 = arith.constant 0 : i32
    %0 = arith.cmpi eq, %arg0, %c0_i32 : i32
    %1 = arith.extui %0 : i1 to i32
    %c0_i32_0 = arith.constant 0 : i32
    %2 = arith.cmpi ne, %1, %c0_i32_0 : i32
    scf.if %2 {
      %cst_37 = arith.constant -1.000000e+30 : f32
      %78 = vector.broadcast %cst_37 : f32 to vector<8x128xf32>
      %c0_38 = arith.constant 0 : index
      %c0_39 = arith.constant 0 : index
      %79 = vector.load %arg4[%c0_38, %c0_39] : memref<8x128xf32, #tpu.memory_space<vmem>>, vector<8x128xf32>
      tpu.vector_store %arg4[%c0_38, %c0_39], %78 {strides = array<i32>} : memref<8x128xf32, #tpu.memory_space<vmem>>, vector<8x128xf32>,
      %cst_40 = arith.constant 0.000000e+00 : f32
      %80 = vector.broadcast %cst_40 : f32 to vector<8x128xf32>
      %c0_41 = arith.constant 0 : index
      %c0_42 = arith.constant 0 : index
      %81 = vector.load %arg5[%c0_41, %c0_42] : memref<8x128xf32, #tpu.memory_space<vmem>>, vector<8x128xf32>
      tpu.vector_store %arg5[%c0_41, %c0_42], %80 {strides = array<i32>} : memref<8x128xf32, #tpu.memory_space<vmem>>, vector<8x128xf32>,
      %cst_43 = arith.constant -1.000000e+30 : f32
      %82 = vector.broadcast %cst_43 : f32 to vector<8x128xf32>
      %c0_44 = arith.constant 0 : index
      %c0_45 = arith.constant 0 : index
      %83 = vector.load %arg6[%c0_44, %c0_45] : memref<8x128xf32, #tpu.memory_space<vmem>>, vector<8x128xf32>
      tpu.vector_store %arg6[%c0_44, %c0_45], %82 {strides = array<i32>} : memref<8x128xf32, #tpu.memory_space<vmem>>, vector<8x128xf32>,
      %cst_46 = arith.constant 0.000000e+00 : f32
      %84 = vector.broadcast %cst_46 : f32 to vector<8x128xf32>
      %c0_47 = arith.constant 0 : index
      %c0_48 = arith.constant 0 : index
      %85 = vector.load %arg7[%c0_47, %c0_48] : memref<8x128xf32, #tpu.memory_space<vmem>>, vector<8x128xf32>
      tpu.vector_store %arg7[%c0_47, %c0_48], %84 {strides = array<i32>} : memref<8x128xf32, #tpu.memory_space<vmem>>, vector<8x128xf32>,
    } else {
    }
    %c1024_i32 = arith.constant 1024 : i32
    %3 = arith.muli %arg0, %c1024_i32 : i32
    %4 = tpu.iota {dimensions = array<i32: 0>} : vector<8x128xi32>
    %5 = tpu.iota {dimensions = array<i32: 1>} : vector<8x128xi32>
    %c128_i32 = arith.constant 128 : i32
    %6 = vector.broadcast %c128_i32 : i32 to vector<8x128xi32>
    %7 = arith.muli %4, %6 : vector<8x128xi32>
    %8 = vector.broadcast %3 : i32 to vector<8x128xi32>
    %9 = arith.addi %8, %7 : vector<8x128xi32>
    %10 = arith.addi %9, %5 : vector<8x128xi32>
    %c0 = arith.constant 0 : index
    %c0_1 = arith.constant 0 : index
    %11 = vector.load %arg1[%c0, %c0_1] : memref<8x128xf32, #tpu.memory_space<vmem>>, vector<8x128xf32>
    %cst = arith.constant 0.000000e+00 : f32
    %12 = vector.broadcast %cst : f32 to vector<8x128xf32>
    %13 = arith.subf %12, %11 : vector<8x128xf32>
    %cst_2 = arith.constant 1.000000e+00 : f32
    %14 = vector.broadcast %cst_2 : f32 to vector<8x128xf32>
    %15 = arith.addf %13, %14 : vector<8x128xf32>
    %cst_3 = arith.constant 2.500000e-01 : f32
    %16 = vector.broadcast %cst_3 : f32 to vector<8x128xf32>
    %17 = arith.addf %15, %16 : vector<8x128xf32>
    %cst_4 = arith.constant 0.000000e+00 : f32
    %18 = vector.broadcast %cst_4 : f32 to vector<8x128xf32>
    %19 = arith.maximumf %17, %18 : vector<8x128xf32>
    %cst_5 = arith.constant 0.000000e+00 : f32
    %20 = vector.broadcast %cst_5 : f32 to vector<8x128xf32>
    %21 = arith.subf %20, %19 : vector<8x128xf32>
    %cst_6 = arith.constant 7.500000e-01 : f32
    %22 = vector.broadcast %cst_6 : f32 to vector<8x128xf32>
    %23 = arith.subf %11, %22 : vector<8x128xf32>
    %24 = arith.mulf %21, %23 : vector<8x128xf32>
    %cst_7 = arith.constant 6.400000e+01 : f32
    %25 = vector.broadcast %cst_7 : f32 to vector<8x128xf32>
    %26 = arith.mulf %24, %25 : vector<8x128xf32>
    %c1500_i32 = arith.constant 1500 : i32
    %27 = vector.broadcast %c1500_i32 : i32 to vector<8x128xi32>
    %28 = arith.cmpi slt, %10, %27 : vector<8x128xi32>
    %cst_8 = arith.constant -1.000000e+30 : f32
    %29 = vector.broadcast %cst_8 : f32 to vector<8x128xf32>
    %30 = arith.select %28, %26, %29 : vector<8x128xi1>, vector<8x128xf32>
    %31 = vector.shape_cast %30 : vector<8x128xf32> to vector<1x8x128xf32>
    %cst_9 = arith.constant dense<0xFF800000> : vector<8x128xf32>
    %32 = vector.multi_reduction <maximumf>, %31, %cst_9 [0] : vector<1x8x128xf32> to vector<8x128xf32>
    %c0_10 = arith.constant 0 : index
    %c0_11 = arith.constant 0 : index
    %33 = vector.load %arg4[%c0_10, %c0_11] : memref<8x128xf32, #tpu.memory_space<vmem>>, vector<8x128xf32>
    %34 = arith.maximumf %33, %32 : vector<8x128xf32>
    %35 = vector.shape_cast %34 : vector<8x128xf32> to vector<1x8x128xf32>
    %36 = arith.subf %31, %35 : vector<1x8x128xf32>
    %37 = math.exp %36 : vector<1x8x128xf32>
    %cst_12 = arith.constant dense<0.000000e+00> : vector<8x128xf32>
    %38 = vector.multi_reduction <add>, %37, %cst_12 [0] : vector<1x8x128xf32> to vector<8x128xf32>
    %c0_13 = arith.constant 0 : index
    %c0_14 = arith.constant 0 : index
    %39 = vector.load %arg5[%c0_13, %c0_14] : memref<8x128xf32, #tpu.memory_space<vmem>>, vector<8x128xf32>
    %40 = arith.subf %33, %34 : vector<8x128xf32>
    %41 = math.exp %40 : vector<8x128xf32>
    %42 = arith.mulf %39, %41 : vector<8x128xf32>
    %43 = arith.addf %42, %38 : vector<8x128xf32>
    %c0_15 = arith.constant 0 : index
    %c0_16 = arith.constant 0 : index
    %44 = vector.load %arg5[%c0_15, %c0_16] : memref<8x128xf32, #tpu.memory_space<vmem>>, vector<8x128xf32>
    tpu.vector_store %arg5[%c0_15, %c0_16], %43 {strides = array<i32>} : memref<8x128xf32, #tpu.memory_space<vmem>>, vector<8x128xf32>,
    %c0_17 = arith.constant 0 : index
    %c0_18 = arith.constant 0 : index
    %45 = vector.load %arg4[%c0_17, %c0_18] : memref<8x128xf32, #tpu.memory_space<vmem>>, vector<8x128xf32>
    tpu.vector_store %arg4[%c0_17, %c0_18], %34 {strides = array<i32>} : memref<8x128xf32, #tpu.memory_space<vmem>>, vector<8x128xf32>,
    %c0_19 = arith.constant 0 : index
    %c0_20 = arith.constant 0 : index
    %46 = vector.load %arg2[%c0_19, %c0_20] : memref<8x128xf32, #tpu.memory_space<vmem>>, vector<8x128xf32>
    %cst_21 = arith.constant 2.500000e-01 : f32
    %47 = vector.broadcast %cst_21 : f32 to vector<8x128xf32>
    %48 = arith.addf %46, %47 : vector<8x128xf32>
    %cst_22 = arith.constant 0.000000e+00 : f32
    %49 = vector.broadcast %cst_22 : f32 to vector<8x128xf32>
    %50 = arith.maximumf %48, %49 : vector<8x128xf32>
    %cst_23 = arith.constant 2.500000e-01 : f32
    %51 = vector.broadcast %cst_23 : f32 to vector<8x128xf32>
    %52 = arith.subf %46, %51 : vector<8x128xf32>
    %53 = arith.mulf %50, %52 : vector<8x128xf32>
    %cst_24 = arith.constant 6.400000e+01 : f32
    %54 = vector.broadcast %cst_24 : f32 to vector<8x128xf32>
    %55 = arith.mulf %53, %54 : vector<8x128xf32>
    %c4000_i32 = arith.constant 4000 : i32
    %56 = vector.broadcast %c4000_i32 : i32 to vector<8x128xi32>
    %57 = arith.cmpi slt, %10, %56 : vector<8x128xi32>
    %cst_25 = arith.constant -1.000000e+30 : f32
    %58 = vector.broadcast %cst_25 : f32 to vector<8x128xf32>
    %59 = arith.select %57, %55, %58 : vector<8x128xi1>, vector<8x128xf32>
    %60 = vector.shape_cast %59 : vector<8x128xf32> to vector<1x8x128xf32>
    %cst_26 = arith.constant dense<0xFF800000> : vector<8x128xf32>
    %61 = vector.multi_reduction <maximumf>, %60, %cst_26 [0] : vector<1x8x128xf32> to vector<8x128xf32>
    %c0_27 = arith.constant 0 : index
    %c0_28 = arith.constant 0 : index
    %62 = vector.load %arg6[%c0_27, %c0_28] : memref<8x128xf32, #tpu.memory_space<vmem>>, vector<8x128xf32>
    %63 = arith.maximumf %62, %61 : vector<8x128xf32>
    %64 = vector.shape_cast %63 : vector<8x128xf32> to vector<1x8x128xf32>
    %65 = arith.subf %60, %64 : vector<1x8x128xf32>
    %66 = math.exp %65 : vector<1x8x128xf32>
    %cst_29 = arith.constant dense<0.000000e+00> : vector<8x128xf32>
    %67 = vector.multi_reduction <add>, %66, %cst_29 [0] : vector<1x8x128xf32> to vector<8x128xf32>
    %c0_30 = arith.constant 0 : index
    %c0_31 = arith.constant 0 : index
    %68 = vector.load %arg7[%c0_30, %c0_31] : memref<8x128xf32, #tpu.memory_space<vmem>>, vector<8x128xf32>
    %69 = arith.subf %62, %63 : vector<8x128xf32>
    %70 = math.exp %69 : vector<8x128xf32>
    %71 = arith.mulf %68, %70 : vector<8x128xf32>
    %72 = arith.addf %71, %67 : vector<8x128xf32>
    %c0_32 = arith.constant 0 : index
    %c0_33 = arith.constant 0 : index
    %73 = vector.load %arg7[%c0_32, %c0_33] : memref<8x128xf32, #tpu.memory_space<vmem>>, vector<8x128xf32>
    tpu.vector_store %arg7[%c0_32, %c0_33], %72 {strides = array<i32>} : memref<8x128xf32, #tpu.memory_space<vmem>>, vector<8x128xf32>,
    %c0_34 = arith.constant 0 : index
    %c0_35 = arith.constant 0 : index
    %74 = vector.load %arg6[%c0_34, %c0_35] : memref<8x128xf32, #tpu.memory_space<vmem>>, vector<8x128xf32>
    tpu.vector_store %arg6[%c0_34, %c0_35], %63 {strides = array<i32>} : memref<8x128xf32, #tpu.memory_space<vmem>>, vector<8x128xf32>,
    %c3_i32 = arith.constant 3 : i32
    %75 = arith.cmpi eq, %arg0, %c3_i32 : i32
    %76 = arith.extui %75 : i1 to i32
    %c0_i32_36 = arith.constant 0 : i32
    %77 = arith.cmpi ne, %76, %c0_i32_36 : i32
    scf.if %77 {
      %c0_37 = arith.constant 0 : index
      %c0_38 = arith.constant 0 : index
      %78 = vector.load %arg4[%c0_37, %c0_38] : memref<8x128xf32, #tpu.memory_space<vmem>>, vector<8x128xf32>
      %c0_39 = arith.constant 0 : index
      %c0_40 = arith.constant 0 : index
      %79 = vector.load %arg5[%c0_39, %c0_40] : memref<8x128xf32, #tpu.memory_space<vmem>>, vector<8x128xf32>
      %80 = vector.shape_cast %78 : vector<8x128xf32> to vector<1x8x128xf32>
      %cst_41 = arith.constant dense<0xFF800000> : vector<1xf32>
      %81 = vector.multi_reduction <maximumf>, %80, %cst_41 [1, 2] : vector<1x8x128xf32> to vector<1xf32>
      %82 = vector.shape_cast %81 : vector<1xf32> to vector<1x1x1xf32>
      %83 = vector.extract %82[0, 0, 0] : f32 from vector<1x1x1xf32>
      %84 = vector.broadcast %83 : f32 to vector<1x1xf32>
      %85 = vector.broadcast %84 : vector<1x1xf32> to vector<8x128xf32>
      %86 = arith.subf %78, %85 : vector<8x128xf32>
      %87 = math.exp %86 : vector<8x128xf32>
      %88 = arith.mulf %79, %87 : vector<8x128xf32>
      %89 = vector.shape_cast %88 : vector<8x128xf32> to vector<1x8x128xf32>
      %cst_42 = arith.constant dense<0.000000e+00> : vector<1xf32>
      %90 = vector.multi_reduction <add>, %89, %cst_42 [1, 2] : vector<1x8x128xf32> to vector<1xf32>
      %91 = vector.shape_cast %90 : vector<1xf32> to vector<1x1x1xf32>
      %92 = vector.extract %91[0, 0, 0] : f32 from vector<1x1x1xf32>
      %93 = vector.broadcast %92 : f32 to vector<1x1xf32>
      %94 = math.log %93 : vector<1x1xf32>
      %95 = arith.addf %84, %94 : vector<1x1xf32>
      %c0_43 = arith.constant 0 : index
      %c0_44 = arith.constant 0 : index
      %96 = vector.load %arg6[%c0_43, %c0_44] : memref<8x128xf32, #tpu.memory_space<vmem>>, vector<8x128xf32>
      %c0_45 = arith.constant 0 : index
      %c0_46 = arith.constant 0 : index
      %97 = vector.load %arg7[%c0_45, %c0_46] : memref<8x128xf32, #tpu.memory_space<vmem>>, vector<8x128xf32>
      %98 = vector.shape_cast %96 : vector<8x128xf32> to vector<1x8x128xf32>
      %cst_47 = arith.constant dense<0xFF800000> : vector<1xf32>
      %99 = vector.multi_reduction <maximumf>, %98, %cst_47 [1, 2] : vector<1x8x128xf32> to vector<1xf32>
      %100 = vector.shape_cast %99 : vector<1xf32> to vector<1x1x1xf32>
      %101 = vector.extract %100[0, 0, 0] : f32 from vector<1x1x1xf32>
      %102 = vector.broadcast %101 : f32 to vector<1x1xf32>
      %103 = vector.broadcast %102 : vector<1x1xf32> to vector<8x128xf32>
      %104 = arith.subf %96, %103 : vector<8x128xf32>
      %105 = math.exp %104 : vector<8x128xf32>
      %106 = arith.mulf %97, %105 : vector<8x128xf32>
      %107 = vector.shape_cast %106 : vector<8x128xf32> to vector<1x8x128xf32>
      %cst_48 = arith.constant dense<0.000000e+00> : vector<1xf32>
      %108 = vector.multi_reduction <add>, %107, %cst_48 [1, 2] : vector<1x8x128xf32> to vector<1xf32>
      %109 = vector.shape_cast %108 : vector<1xf32> to vector<1x1x1xf32>
      %110 = vector.extract %109[0, 0, 0] : f32 from vector<1x1x1xf32>
      %111 = vector.broadcast %110 : f32 to vector<1x1xf32>
      %112 = math.log %111 : vector<1x1xf32>
      %113 = arith.addf %102, %112 : vector<1x1xf32>
      %114 = arith.addf %95, %113 : vector<1x1xf32>
      %cst_49 = arith.constant 0.000000e+00 : f32
      %115 = vector.broadcast %cst_49 : f32 to vector<1x1xf32>
      %116 = arith.maximumf %114, %115 : vector<1x1xf32>
      %117 = math.absf %114 : vector<1x1xf32>
      %cst_50 = arith.constant 0.000000e+00 : f32
      %118 = vector.broadcast %cst_50 : f32 to vector<1x1xf32>
      %119 = arith.subf %118, %117 : vector<1x1xf32>
      %120 = math.exp %119 : vector<1x1xf32>
      %121 = math.log1p %120 : vector<1x1xf32>
      %122 = arith.addf %116, %121 : vector<1x1xf32>
      %c0_51 = arith.constant 0 : index
      %c0_52 = arith.constant 0 : index
      %123 = vector.load %arg3[%c0_51, %c0_52] : memref<1x1xf32, #tpu.memory_space<vmem>>, vector<1x1xf32>
      tpu.vector_store %arg3[%c0_51, %c0_52], %122 {strides = array<i32>} : memref<1x1xf32, #tpu.memory_space<vmem>>, vector<1x1xf32>,
    } else {
    }
    return
  }
  func.func @transform_0(%arg0: i32) -> (i32, i32) {
    %c1_i32 = arith.constant 1 : i32
    %0 = arith.minsi %arg0, %c1_i32 : i32
    %c0_i32 = arith.constant 0 : i32
    %c0_i32_0 = arith.constant 0 : i32
    return %0, %c0_i32 : i32, i32
  }
  func.func @transform_1(%arg0: i32) -> (i32, i32) {
    %c3_i32 = arith.constant 3 : i32
    %0 = arith.minsi %arg0, %c3_i32 : i32
    %c0_i32 = arith.constant 0 : i32
    %c0_i32_0 = arith.constant 0 : i32
    return %0, %c0_i32 : i32, i32
  }
  func.func @transform_2(%arg0: i32) -> (i32, i32) {
    %c0_i32 = arith.constant 0 : i32
    %c0_i32_0 = arith.constant 0 : i32
    %c0_i32_1 = arith.constant 0 : i32
    return %c0_i32, %c0_i32_0 : i32, i32
  }
}

</mosaic_0001>

<llo_original>
// kernel: tpu_custom_call.1
$region0: #{tpu_custom_call.1}
  #allocation0 [shape = 'u32[]', space=smem, size = 0x4, offset = 0x4, fixed_abs, tag = 'smem constant byte address 0x4 - core index']
  #allocation1 [shape = 'u32[144,128]{1,0:T(1,128)}', space=vmem, size = 0x12000, scoped, tag = 'internal scratch']
  #allocation2 [shape = 'f32[8,128]{1,0:T(8,128)}', space=vmem, size = 0x1000, scoped, tag = 'scratch operand']
  #allocation3 [shape = 'f32[8,128]{1,0:T(8,128)}', space=vmem, size = 0x1000, scoped, tag = 'scratch operand']
  #allocation4 [shape = 'f32[8,128]{1,0:T(8,128)}', space=vmem, size = 0x1000, scoped, tag = 'scratch operand']
  #allocation5 [shape = 'f32[8,128]{1,0:T(8,128)}', space=vmem, size = 0x1000, scoped, tag = 'scratch operand']
  %s0 = inlined_call_operand.hbm [shape: f32[16,128], index: 0, kind: input, shape index: {}]
  %s1 = inlined_call_operand.hbm [shape: f32[32,128], index: 1, kind: input, shape index: {}]
  %s2 = inlined_call_operand.hbm [shape: f32[1,1], index: 2, kind: output, shape index: {}]
  %s3 = sld [smem:[#allocation0]]
  $region57: #{tpu_custom_call.1} parent=0
    _
  %s5 = ssub.s32 1, %s3
  %s6 = scalar_select 0, %s5, %s3
  $region1: #{tpu_custom_call.1} parent=0
    #allocation6 [shape = 'u8[8192]{0}', space=vmem, size = 0x2000, scoped, tag = 'input window, operand 0']
    #allocation7 [shape = 's32[2]{0}', space=sflag, size = 0x8, scoped, tag = 'scoped memory for tpu_custom_call.1']
    #allocation8 [shape = 's32[2]{0}', space=sflag, size = 0x8, scoped, tag = 'scoped memory for tpu_custom_call.1']
    #allocation9 [shape = 'u8[8192]{0}', space=vmem, size = 0x2000, scoped, tag = 'input window, operand 1']
    #allocation10 [shape = 's32[2]{0}', space=sflag, size = 0x8, scoped, tag = 'scoped memory for tpu_custom_call.1']
    #allocation11 [shape = 'u8[512]{0}', space=vmem, size = 0x400, scoped, tag = 'output window, operand 0, single buffered']
    %7 = vsyncpa [#allocation7], 0
    %s8 = scalar_lea.sflag [#allocation7], 1
    %9 = vsyncpa %s8, 0
    %10 = vsyncpa [#allocation10], 0
    %s11 = scalar_lea.sflag [#allocation10], 1
    %12 = vsyncpa %s11, 0
    %13 = vsyncpa [#allocation8], 0
    loop: start=0, step=1, limit=6
    $region2: #{tpu_custom_call.1} parent=1 // loop_pre_header
      _
    $region3: #{tpu_custom_call.1} parent=1 // loop_header
      %s15 = sphi 0, %s19
      %p16 = scmp.ge.s32.totalorder %s15, 6
      %s29 = sphi 0, %s31
      %s32 = sphi 0, %s29
      %s33 = sphi 0, %s32
      %s49 = sphi 0, %s33
      %s59 = sphi 0, %s61
      %s62 = sphi 0, %s59
      %s63 = sphi 0, %s62
      %s79 = sphi 0, %s63
      %s83 = sphi 0, %s83
      %s85 = sphi 0, %s83
      %s86 = sphi 0, %s85
      %s100 = sphi 0, %s86
    $region4: #{tpu_custom_call.1} parent=1 // loop_header_branch
      %18 = sbr.rel (%p16) target = $region8
    $region5: #{tpu_custom_call.1} parent=1 // loop_body
      %s20 = ssub.s32 %s15, 1
      %s21 = ssub.s32 %s15, 2
      %s22 = sadd.s32 %s15, 1
      %p23 = scmp.lt.s32.totalorder %s15, 1
      %s24 = scalar_select %p23, %s15, 1
      %p25 = scmp.lt.s32.totalorder %s22, 1
      %s26 = scalar_select %p25, %s22, 1
      %s27 = ssub.s32 %s24, %s26
      %p28 = scmp.eq.s32.totalorder %s27, 0
      %s30 = sadd.s32 %s29, 1
      %s31 = scalar_select %p28, %s29, %s30
      %p34 = pneg %p28
      %p35 = scmp.eq.s32.totalorder %s15, 3
      %p36 = por %p34, %p35
      %p37 = scmp.ne.s32.totalorder %s29, %s32
      %p38 = scmp.eq.s32.totalorder %s15, 0
      %p39 = por %p37, %p38
      %p40 = scmp.ne.s32.totalorder %s29, %s32
      %p41 = scmp.eq.s32.totalorder %s20, 3
      %p42 = por %p40, %p41
      %p43 = scmp.ne.s32.totalorder %s32, %s33
      %p44 = scmp.eq.s32.totalorder %s20, 0
      %p45 = por %p43, %p44
      %p46 = scmp.ne.s32.totalorder %s32, %s33
      %p47 = scmp.eq.s32.totalorder %s21, 3
      %p48 = por %p46, %p47
      %p50 = scmp.ne.s32.totalorder %s33, %s49
      %p51 = scmp.eq.s32.totalorder %s21, 0
      %p52 = por %p50, %p51
      %p53 = scmp.lt.s32.totalorder %s15, 3
      %s54 = scalar_select %p53, %s15, 3
      %p55 = scmp.lt.s32.totalorder %s22, 3
      %s56 = scalar_select %p55, %s22, 3
      %s57 = ssub.s32 %s54, %s56
      %p58 = scmp.eq.s32.totalorder %s57, 0
      %s60 = sadd.s32 %s59, 1
      %s61 = scalar_select %p58, %s59, %s60
      %p64 = pneg %p58
      %p65 = scmp.eq.s32.totalorder %s15, 3
      %p66 = por %p64, %p65
      %p67 = scmp.ne.s32.totalorder %s59, %s62
      %p68 = scmp.eq.s32.totalorder %s15, 0
      %p69 = por %p67, %p68
      %p70 = scmp.ne.s32.totalorder %s59, %s62
      %p71 = scmp.eq.s32.totalorder %s20, 3
      %p72 = por %p70, %p71
      %p73 = scmp.ne.s32.totalorder %s62, %s63
      %p74 = scmp.eq.s32.totalorder %s20, 0
      %p75 = por %p73, %p74
      %p76 = scmp.ne.s32.totalorder %s62, %s63
      %p77 = scmp.eq.s32.totalorder %s21, 3
      %p78 = por %p76, %p77
      %p80 = scmp.ne.s32.totalorder %s63, %s79
      %p81 = scmp.eq.s32.totalorder %s21, 0
      %p82 = por %p80, %p81
      %s84 = sadd.s32 %s83, 1
      %p87 = scmp.eq.s32.totalorder %s15, 3
      %p88 = scmp.ne.s32.totalorder %s83, %s85
      %p89 = scmp.eq.s32.totalorder %s15, 0
      %p90 = por %p88, %p89
      %p91 = scmp.ne.s32.totalorder %s83, %s85
      %p92 = scmp.eq.s32.totalorder %s20, 3
      %p93 = por %p91, %p92
      %p94 = scmp.ne.s32.totalorder %s85, %s86
      %p95 = scmp.eq.s32.totalorder %s20, 0
      %p96 = por %p94, %p95
      %p97 = scmp.ne.s32.totalorder %s85, %s86
      %p98 = scmp.eq.s32.totalorder %s21, 3
      %p99 = por %p97, %p98
      %p101 = scmp.ne.s32.totalorder %s86, %s100
      %p102 = scmp.eq.s32.totalorder %s21, 0
      %p103 = por %p101, %p102
      %p104 = scmp.le.s32.totalorder 1, %s15
      %p105 = scmp.lt.s32.totalorder %s15, 5
      %p106 = pnand %p104, %p105
      %p107 = pneg %p106
      // Predicated region
      $region9: #{tpu_custom_call.1} parent=5 // pred_check
        _
      $region10: #{tpu_custom_call.1} parent=5 // pred_check_branch
        %109 = sbr.rel (%p106) target = $region12
      $region11: #{tpu_custom_call.1} parent=5 // pred_region
        %s110 = ssub.s32 %s15, 1
      $region12: #{tpu_custom_call.1} parent=5 // pred_fallthru
        _
      %p111 = scmp.lt.s32.totalorder %s15, 4
      // Predicated region
      $region13: #{tpu_custom_call.1} parent=5 // pred_check
        %p112 = pneg %p111
      $region14: #{tpu_custom_call.1} parent=5 // pred_check_branch
        %114 = sbr.rel (%p112) target = $region16
      $region15: #{tpu_custom_call.1} parent=5 // pred_region
        // Predicated region
        $region17: #{tpu_custom_call.1} parent=15 // pred_check
          %p115 = pneg %p39
        $region18: #{tpu_custom_call.1} parent=15 // pred_check_branch
          %117 = sbr.rel (%p115) target = $region20
        $region19: #{tpu_custom_call.1} parent=15 // pred_region
          %s118 = sand.u32 %s29, 1
          %s119 = scalar_lea.sflag [#allocation7], %s118
          %s120 = sand.u32 %s29, 1
          %s121 = smul.addr %s120, 8
          %s122 = scalar_lea.vmem [#allocation6], %s121
          %p123 = scmp.lt.s32.totalorder %s15, 1
          %s124 = scalar_select %p123, %s15, 1
          %s126 = ssub.s32 128, 128
          %127 = vsyncadd %s119, %s126
          %s128 = smul.addr %s124, 128
          %s129 = scalar_lea.hbm %s0, %s128
          %s131 = sshll.u32 %s122, 4
          %s132 = int_to_ptr.vmem [resolvable:$true] %s131
          %134 = dma.hbm_to_vmem [thread:$0]  %s129, 128, %s132, %s119
        $region20: #{tpu_custom_call.1} parent=15 // pred_fallthru
          _
        // Predicated region
        $region21: #{tpu_custom_call.1} parent=15 // pred_check
          %p135 = pneg %p69
        $region22: #{tpu_custom_call.1} parent=15 // pred_check_branch
          %137 = sbr.rel (%p135) target = $region24
        $region23: #{tpu_custom_call.1} parent=15 // pred_region
          %s138 = sand.u32 %s59, 1
          %s139 = scalar_lea.sflag [#allocation10], %s138
          %s140 = sand.u32 %s59, 1
          %s141 = smul.addr %s140, 8
          %s142 = scalar_lea.vmem [#allocation9], %s141
          %p143 = scmp.lt.s32.totalorder %s15, 3
          %s144 = scalar_select %p143, %s15, 3
          %s146 = ssub.s32 128, 128
          %147 = vsyncadd %s139, %s146
          %s148 = smul.addr %s144, 128
          %s149 = scalar_lea.hbm %s1, %s148
          %s151 = sshll.u32 %s142, 4
          %s152 = int_to_ptr.vmem [resolvable:$true] %s151
          %154 = dma.hbm_to_vmem [thread:$0]  %s149, 128, %s152, %s139
        $region24: #{tpu_custom_call.1} parent=15 // pred_fallthru
          _
      $region16: #{tpu_custom_call.1} parent=5 // pred_fallthru
        _
      %p155 = scmp.le.s32.totalorder 1, %s15
      %p156 = scmp.lt.s32.totalorder %s15, 5
      %p157 = pnand %p155, %p156
      %p158 = pneg %p157
      // Predicated region
      $region25: #{tpu_custom_call.1} parent=5 // pred_check
        _
      $region26: #{tpu_custom_call.1} parent=5 // pred_check_branch
        %160 = sbr.rel (%p157) target = $region28
      $region27: #{tpu_custom_call.1} parent=5 // pred_region
        %s161 = ssub.s32 %s15, 1
        %s162 = sand.u32 %s32, 1
        %s163 = scalar_lea.sflag [#allocation7], %s162
        %s164 = sand.u32 %s32, 1
        %s165 = smul.addr %s164, 8
        %s166 = scalar_lea.vmem [#allocation6], %s165
        // Predicated region
        $region29: #{tpu_custom_call.1} parent=27 // pred_check
          %p167 = pneg %p45
        $region30: #{tpu_custom_call.1} parent=27 // pred_check_branch
          %169 = sbr.rel (%p167) target = $region32
        $region31: #{tpu_custom_call.1} parent=27 // pred_region
          %170 = dma.done %s163, 128
        $region32: #{tpu_custom_call.1} parent=27 // pred_fallthru
          _
        %s171 = sand.u32 %s62, 1
        %s172 = scalar_lea.sflag [#allocation10], %s171
        %s173 = sand.u32 %s62, 1
        %s174 = smul.addr %s173, 8
        %s175 = scalar_lea.vmem [#allocation9], %s174
        // Predicated region
        $region33: #{tpu_custom_call.1} parent=27 // pred_check
          %p176 = pneg %p75
        $region34: #{tpu_custom_call.1} parent=27 // pred_check_branch
          %178 = sbr.rel (%p176) target = $region36
        $region35: #{tpu_custom_call.1} parent=27 // pred_region
          %179 = dma.done %s172, 128
        $region36: #{tpu_custom_call.1} parent=27 // pred_fallthru
          _
        %s180 = sand.u32 %s32, 1
        %s181 = scalar_lea.sflag [#allocation7], %s180
        %s182 = sand.u32 %s32, 1
        %s183 = smul.addr %s182, 8
        %s184 = scalar_lea.vmem [#allocation6], %s183
        %p185 = pneg %p45
        %p186 = pneg %p42
        %s187 = sand.u32 %s62, 1
        %s188 = scalar_lea.sflag [#allocation10], %s187
        %s189 = sand.u32 %s62, 1
        %s190 = smul.addr %s189, 8
        %s191 = scalar_lea.vmem [#allocation9], %s190
        %p192 = pneg %p75
        %p193 = pneg %p72
        %p194 = pneg %p96
        %p195 = pneg %p93
        %p196 = scmp.lt.s32.totalorder %s20, 1
        %s197 = scalar_select %p196, %s20, 1
        %p198 = scmp.lt.s32.totalorder %s20, 3
        %s199 = scalar_select %p198, %s20, 3
        %p200 = scmp.eq.s32.totalorder %s20, 0
        // Predicated region
        $region37: #{tpu_custom_call.1} parent=27 // pred_check
          %p201 = pneg %p200
        $region38: #{tpu_custom_call.1} parent=27 // pred_check_branch
          %203 = sbr.rel (%p201) target = $region40
        $region39: #{tpu_custom_call.1} parent=27 // pred_region
          %204 = vst [vmem:[#allocation2] sm:$0xff] -1e+30
          %205 = vst [vmem:[#allocation3] sm:$0xff] 0.0
          %206 = vst [vmem:[#allocation4] sm:$0xff] -1e+30
          %207 = vst [vmem:[#allocation5] sm:$0xff] 0.0
        $region40: #{tpu_custom_call.1} parent=27 // pred_fallthru
          _
        %s208 = smul.u32 %s20, 1024
        %v209 = vlaneseq
        %v210 = vshrl.u32 %v209, 7
        %v211 = vlaneseq
        %v212 = vand.u32 %v211, 127
        %v213 = vmul.u32 %v210, 128
        %v214 = vstv %s208
        %v215 = vadd.s32 %v214, %v213
        %v216 = vadd.s32 %v215, %v212
        %v217 = vld [vmem:[%s166] sm:$0xff]
        %v218 = vsub.f32 0.0, %v217
        %v219 = vadd.f32 %v218, 1.0
        %v220 = vadd.f32 %v219, 0.25
        %v221 = vmax.f32 %v220, 0.0
        %v222 = vsub.f32 0.0, %v221
        %v223 = vsub.f32 %v217, 0.75
        %v224 = vmul.f32 %v222, %v223
        %v225 = vmul.f32 %v224, 64.0
        %vm226 = vcmp.lt.s32.totalorder %v216, 1500
        %v227 = vsel %vm226, %v225, -1e+30
        %v228 = vld [vmem:[#allocation2] sm:$0xff]
        %v229 = vmax.f32 %v228, %v227
        %v230 = vsub.f32 %v227, %v229
        %v231 = vmul.f32 %v230, 1.442695
        %v232 = vpow.pop %v231
        %v233 = vadd.f32 %v232, 0.0
        %v234 = vld [vmem:[#allocation3] sm:$0xff]
        %v235 = vsub.f32 %v228, %v229
        %v236 = vmul.f32 %v235, 1.442695
        %v237 = vpow.pop %v236
        %v238 = vmul.f32 %v234, %v237
        %v239 = vadd.f32 %v238, %v233
        %240 = vst [vmem:[#allocation3] sm:$0xff] %v239
        %241 = vst [vmem:[#allocation2] sm:$0xff] %v229
        %v242 = vld [vmem:[%s175] sm:$0xff]
        %v243 = vadd.f32 %v242, 0.25
        %v244 = vmax.f32 %v243, 0.0
        %v245 = vsub.f32 %v242, 0.25
        %v246 = vmul.f32 %v244, %v245
        %v247 = vmul.f32 %v246, 64.0
        %vm248 = vcmp.lt.s32.totalorder %v216, 4000
        %v249 = vsel %vm248, %v247, -1e+30
        %v250 = vld [vmem:[#allocation4] sm:$0xff]
        %v251 = vmax.f32 %v250, %v249
        %v252 = vsub.f32 %v249, %v251
        %v253 = vmul.f32 %v252, 1.442695
        %v254 = vpow.pop %v253
        %v255 = vadd.f32 %v254, 0.0
        %v256 = vld [vmem:[#allocation5] sm:$0xff]
        %v257 = vsub.f32 %v250, %v251
        %v258 = vmul.f32 %v257, 1.442695
        %v259 = vpow.pop %v258
        %v260 = vmul.f32 %v256, %v259
        %v261 = vadd.f32 %v260, %v255
        %262 = vst [vmem:[#allocation5] sm:$0xff] %v261
        %263 = vst [vmem:[#allocation4] sm:$0xff] %v251
        %p264 = scmp.eq.s32.totalorder %s20, 3
        // Predicated region
        $region41: #{tpu_custom_call.1} parent=27 // pred_check
          %p265 = pneg %p264
        $region42: #{tpu_custom_call.1} parent=27 // pred_check_branch
          %267 = sbr.rel (%p265) target = $region44
        $region43: #{tpu_custom_call.1} parent=27 // pred_region
          %v268 = vld [vmem:[#allocation2] sm:$0xff]
          %v269 = vld [vmem:[#allocation3] sm:$0xff]
          %270 = vmax.xlane.f32.xlu0 %v268
          %v271 = vpop.xlane.xlu0 %270
          %v272 = vrot.slane %v271, 4
          %v273 = vmax.f32 %v271, %v272
          %v274 = vrot.slane %v273, 2
          %v275 = vmax.f32 %v273, %v274
          %v276 = vrot.slane %v275, 1
          %v277 = vmax.f32 %v275, %v276
          %s278 = vtos %v277
          %v279 = vstv %s278
          %v280 = vsub.f32 %v268, %v279
          %v281 = vmul.f32 %v280, 1.442695
          %v282 = vpow.pop %v281
          %v283 = vmul.f32 %v269, %v282
          %284 = vadd.xlane.f32.xlu0 %v283
          %v285 = vpop.xlane.xlu0 %284
          %v286 = vrot.slane %v285, 4
          %v287 = vadd.f32 %v285, %v286
          %v288 = vrot.slane %v287, 2
          %v289 = vadd.f32 %v287, %v288
          %v290 = vrot.slane %v289, 1
          %v291 = vadd.f32 %v289, %v290
          %s292 = vtos %v291
          %v293 = vstv %s292
          %v294 = vlog2.pop %v293
          %v295 = vmul.f32 %v294, 0.6931472
          %v296 = vadd.f32 %v279, %v295
          %v297 = vld [vmem:[#allocation4] sm:$0xff]
          %v298 = vld [vmem:[#allocation5] sm:$0xff]
          %299 = vmax.xlane.f32.xlu0 %v297
          %v300 = vpop.xlane.xlu0 %299
          %v301 = vrot.slane %v300, 4
          %v302 = vmax.f32 %v300, %v301
          %v303 = vrot.slane %v302, 2
          %v304 = vmax.f32 %v302, %v303
          %v305 = vrot.slane %v304, 1
          %v306 = vmax.f32 %v304, %v305
          %s307 = vtos %v306
          %v308 = vstv %s307
          %v309 = vsub.f32 %v297, %v308
          %v310 = vmul.f32 %v309, 1.442695
          %v311 = vpow.pop %v310
          %v312 = vmul.f32 %v298, %v311
          %313 = vadd.xlane.f32.xlu0 %v312
          %v314 = vpop.xlane.xlu0 %313
          %v315 = vrot.slane %v314, 4
          %v316 = vadd.f32 %v314, %v315
          %v317 = vrot.slane %v316, 2
          %v318 = vadd.f32 %v316, %v317
          %v319 = vrot.slane %v318, 1
          %v320 = vadd.f32 %v318, %v319
          %s321 = vtos %v320
          %v322 = vstv %s321
          %v323 = vlog2.pop %v322
          %v324 = vmul.f32 %v323, 0.6931472
          %v325 = vadd.f32 %v308, %v324
          %v326 = vadd.f32 %v296, %v325
          %v327 = vmax.f32 %v326, 0.0
          %v328 = vand.u32 2147483647, %v326
          %v329 = vsub.f32 0.0, %v328
          %v330 = vmul.f32 %v329, 1.442695
          %v331 = vpow.pop %v330
          %v332 = vadd.f32 %v331, 1.0
          %v333 = vlog2.pop %v332
          %v334 = vmul.f32 %v333, 0.6931472
          %v335 = vmul.f32 -0.5, %v331
          %v336 = vadd.f32 %v335, 1.0
          %v337 = vmul.f32 %v336, %v331
          %v338 = vand.u32 2147483647, %v331
          %vm339 = vcmp.lt.f32.partialorder %v338, 0.0004427343
          %v340 = vsel %vm339, %v337, %v334
          %v341 = vadd.f32 %v327, %v340
          %vm342 = vcmask 0
          %343 = vst.msk [vmem:[#allocation11] sm:$0x1] %vm342, %v341
        $region44: #{tpu_custom_call.1} parent=27 // pred_fallthru
          _
        // Predicated region
        $region45: #{tpu_custom_call.1} parent=27 // pred_check
          %p344 = pneg %p93
        $region46: #{tpu_custom_call.1} parent=27 // pred_check_branch
          %346 = sbr.rel (%p344) target = $region48
        $region47: #{tpu_custom_call.1} parent=27 // pred_region
          %s348 = ssub.s32 16, 16
          %349 = vsyncadd [#allocation8], %s348
          %s351 = sshll.u32 [#allocation11], 4
          %s352 = int_to_ptr.vmem [resolvable:$true] %s351
          %354 = dma.vmem_to_hbm [thread:$0]  %s352, 16, %s2, [#allocation8]
        $region48: #{tpu_custom_call.1} parent=27 // pred_fallthru
          _
        // Predicated region
        $region49: #{tpu_custom_call.1} parent=27 // pred_check
          %p355 = pneg %p93
        $region50: #{tpu_custom_call.1} parent=27 // pred_check_branch
          %357 = sbr.rel (%p355) target = $region52
        $region51: #{tpu_custom_call.1} parent=27 // pred_region
          %358 = dma.done [#allocation8], 16
        $region52: #{tpu_custom_call.1} parent=27 // pred_fallthru
          _
      $region28: #{tpu_custom_call.1} parent=5 // pred_fallthru
        _
      %p359 = scmp.le.s32.totalorder 2, %s15
      // Predicated region
      $region53: #{tpu_custom_call.1} parent=5 // pred_check
        %p360 = pneg %p359
      $region54: #{tpu_custom_call.1} parent=5 // pred_check_branch
        %362 = sbr.rel (%p360) target = $region56
      $region55: #{tpu_custom_call.1} parent=5 // pred_region
        %s363 = ssub.s32 %s15, 2
      $region56: #{tpu_custom_call.1} parent=5 // pred_fallthru
        _
    $region6: #{tpu_custom_call.1} parent=1 // loop_footer
      %s19 = sadd.s32 1, %s15
    $region7: #{tpu_custom_call.1} parent=1 // loop_footer_branch
      %14 = sbr.rel target = $region3
    $region8: #{tpu_custom_call.1} parent=1 // loop_exit
      _
    %364 = vsyncpa [#allocation7], 1
    %s365 = scalar_lea.sflag [#allocation7], 1
    %366 = vsyncpa %s365, 1
    %367 = vsyncpa [#allocation10], 1
    %s368 = scalar_lea.sflag [#allocation10], 1
    %369 = vsyncpa %s368, 1
    %370 = vsyncpa [#allocation8], 1
    %s371 = scalar_lea.sflag [#allocation8], 1
    %372 = vsyncpa %s371, 1

</llo_original>
